<compile_context>
chip_gen: v7x
topology: tpu7x:2x2x1
jax: 0.10.0
libtpu: 0.0.40
codegen_flags: <defaults>
</compile_context>

<pallas_src>
import jax
import jax.numpy as jnp
from jax.experimental import pallas as pl
from jax.experimental.pallas import tpu as pltpu


def _round_up(x, m):
    return (x + m - 1) // m * m


def _lstm_step(ctx, h, c, w_ctx, w_h, b, w_fc, b_fc):
    """Fused-weight LSTMCell step + linear head (shared by kernel and strict ref).

    ctx: (B, C), h/c: (B, H), w_ctx: (C, 4H), w_h: (H, 4H), b: (1, 4H),
    w_fc: (H, O), b_fc: (1, O). All float32; MXU accumulates in f32.
    """
    H = h.shape[1]
    gates = (jnp.dot(ctx, w_ctx, preferred_element_type=jnp.float32)
             + jnp.dot(h, w_h, preferred_element_type=jnp.float32)
             + b)
    # PyTorch LSTMCell gate order: input, forget, cell(g), output.
    i_g = jax.nn.sigmoid(gates[:, 0 * H:1 * H])
    f_g = jax.nn.sigmoid(gates[:, 1 * H:2 * H])
    g_g = jnp.tanh(gates[:, 2 * H:3 * H])
    o_g = jax.nn.sigmoid(gates[:, 3 * H:4 * H])
    c_new = f_g * c + i_g * g_g
    h_new = o_g * jnp.tanh(c_new)
    mel = jnp.dot(h_new, w_fc, preferred_element_type=jnp.float32) + b_fc
    return mel, h_new, c_new


def decoder_seq_kernel(ctx_ref, h0_ref, c0_ref,
                       w_ctx_ref, w_h_ref, b_ref, w_fc_ref, b_fc_ref,
                       out_ref, h_scr, c_scr):
    """grid=(T,): one LSTM step per grid iteration; h/c carried in VMEM scratch."""
    t = pl.program_id(0)

    @pl.when(t == 0)
    def _():
        h_scr[...] = h0_ref[...].astype(jnp.float32)
        c_scr[...] = c0_ref[...].astype(jnp.float32)

    mel, h_new, c_new = _lstm_step(ctx_ref[...], h_scr[...], c_scr[...],
                                   w_ctx_ref[...], w_h_ref[...], b_ref[...],
                                   w_fc_ref[...], b_fc_ref[...])

    h_scr[...] = h_new
    c_scr[...] = c_new

    # Lane-dense packed output: [mel | h_new | c_new | zero-pad] -> one full-width
    # (B, P) store (P is a multiple of 128 lanes), instead of 3 masked partial stores.
    B, P = out_ref.shape
    O = b_fc_ref.shape[1]
    H = h0_ref.shape[1]
    pad = P - (O + 2 * H)
    pieces = [mel, h_new, c_new]
    if pad > 0:
        pieces.append(jnp.zeros((B, pad), jnp.float32))
    out_ref[...] = jnp.concatenate(pieces, axis=1).astype(out_ref.dtype)


def prep_decoder_params(params, context_dim):
    """ONE-TIME parameter layout prep (do not call per decode step).

    - transposes weights to (in_features, out_features) for row-major MXU matmuls
    - folds the hidden-state columns of w_ih into w_hh (removes the concat and
      one matmul per step)
    - pre-sums the two LSTM biases into a single (1, 4H) bias
    For v6e/v7x you may store the three weight matrices in bfloat16 here (keep
    the elementwise LSTM math and MXU accumulation in f32).
    """
    C = context_dim
    w_ih = params["w_ih"].astype(jnp.float32)   # (4H, C+H)
    w_hh = params["w_hh"].astype(jnp.float32)   # (4H, H)
    return {
        "w_ctx": w_ih[:, :C].T,                                   # (C, 4H)
        "w_h":   (w_ih[:, C:] + w_hh).T,                          # (H, 4H) fused
        "b":     (params["b_ih"] + params["b_hh"]).reshape(1, -1).astype(jnp.float32),
        "w_fc":  params["w_fc"].T.astype(jnp.float32),            # (H, O)
        "b_fc":  params["b_fc"].reshape(1, -1).astype(jnp.float32),
    }


def _decoder_forward_seq_impl(context_seq, h0, c0, prepped):
    """T decoder steps fused in ONE pallas_call."""
    T, B, C = context_seq.shape
    H = h0.shape[1]
    O = prepped["b_fc"].shape[1]
    P = _round_up(O + 2 * H, 128)   # lane-dense packed output width

    const = lambda t: (0, 0)        # weights / initial state: VMEM-resident block

    grid_spec = pltpu.PrefetchScalarGridSpec(
        num_scalar_prefetch=0,
        grid=(T,),
        in_specs=[
            pl.BlockSpec((None, B, C), lambda t: (t, 0, 0)),   # context for step t
            pl.BlockSpec((B, H), const),                       # h0
            pl.BlockSpec((B, H), const),                       # c0
            pl.BlockSpec((C, 4 * H), const),                   # w_ctx
            pl.BlockSpec((H, 4 * H), const),                   # w_h (fused)
            pl.BlockSpec((1, 4 * H), const),                   # b (fused)
            pl.BlockSpec((H, O), const),                       # w_fc
            pl.BlockSpec((1, O), const),                       # b_fc
        ],
        out_specs=pl.BlockSpec((None, B, P), lambda t: (t, 0, 0)),
        scratch_shapes=[pltpu.VMEM((B, H), jnp.float32),       # h carry
                        pltpu.VMEM((B, H), jnp.float32)],      # c carry
    )

    packed = pl.pallas_call(
        decoder_seq_kernel,
        out_shape=jax.ShapeDtypeStruct((T, B, P), jnp.float32),
        grid_spec=grid_spec,
        compiler_params=pltpu.CompilerParams(
            # h/c carry across steps -> the time axis must run sequentially.
            dimension_semantics=("arbitrary",)),
    )(context_seq, h0, c0,
      prepped["w_ctx"], prepped["w_h"], prepped["b"],
      prepped["w_fc"], prepped["b_fc"])

    mel_seq = packed[:, :, :O]
    h_seq = packed[:, :, O:O + H]
    c_seq = packed[:, :, O + H:O + 2 * H]
    return mel_seq, h_seq, c_seq


decoder_forward_seq = jax.jit(_decoder_forward_seq_impl)


def decoder_forward(context, previous_hidden, previous_cell, prepped):
    """Matches PyTorch Decoder.forward (a single step): returns (mel, h_new, c_new)."""
    mel, h_seq, c_seq = decoder_forward_seq(context[None], previous_hidden,
                                            previous_cell, prepped)
    return mel[0], h_seq[0], c_seq[0]


# ----------------------------- references / init -----------------------------

def init_decoder_params(key, input_size, hidden_size, output_size):
    """Deterministic init mirroring PyTorch default uniform(-1/sqrt(H), 1/sqrt(H))."""
    ks = jax.random.split(key, 6)
    bound = 1.0 / jnp.sqrt(hidden_size)
    u = lambda k, shape, b: jax.random.uniform(k, shape, jnp.float32, -b, b)
    return {
        "w_ih": u(ks[0], (4 * hidden_size, input_size), bound),
        "w_hh": u(ks[1], (4 * hidden_size, hidden_size), bound),
        "b_ih": u(ks[2], (4 * hidden_size,), bound),
        "b_hh": u(ks[3], (4 * hidden_size,), bound),
        "w_fc": u(ks[4], (output_size, hidden_size), bound),
        "b_fc": u(ks[5], (output_size,), bound),
    }


def decoder_ref(context, h_prev, c_prev, params):
    """Pure-JAX reference faithful to torch.nn.LSTMCell + nn.Linear (unfused weights)."""
    H = h_prev.shape[1]
    x = jnp.concatenate([context, h_prev], axis=1)
    gates = (x @ params["w_ih"].T + params["b_ih"]
             + h_prev @ params["w_hh"].T + params["b_hh"])
    i_g = jax.nn.sigmoid(gates[:, 0 * H:1 * H])
    f_g = jax.nn.sigmoid(gates[:, 1 * H:2 * H])
    g_g = jnp.tanh(gates[:, 2 * H:3 * H])
    o_g = jax.nn.sigmoid(gates[:, 3 * H:4 * H])
    c_new = f_g * c_prev + i_g * g_g
    h_new = o_g * jnp.tanh(c_new)
    mel = h_new @ params["w_fc"].T + params["b_fc"]
    return mel, h_new, c_new


def decoder_ref_seq(context_seq, h0, c0, params):
    mels, hs, cs = [], [], []
    h, c = h0, c0
    for t in range(context_seq.shape[0]):
        mel, h, c = decoder_ref(context_seq[t], h, c, params)
        mels.append(mel); hs.append(h); cs.append(c)
    return jnp.stack(mels), jnp.stack(hs), jnp.stack(cs)


def decoder_ref_folded_seq(context_seq, h0, c0, prepped):
    """Same fused-weight math as the kernel, in plain XLA (tight plumbing check)."""
    mels, hs, cs = [], [], []
    h, c = h0, c0
    for t in range(context_seq.shape[0]):
        mel, h, c = _lstm_step(context_seq[t], h, c, prepped["w_ctx"],
                               prepped["w_h"], prepped["b"],
                               prepped["w_fc"], prepped["b_fc"])
        mels.append(mel); hs.append(h); cs.append(c)
    return jnp.stack(mels), jnp.stack(hs), jnp.stack(cs)


if __name__ == "__main__":
    # Small shapes consistent with the forward: LSTMCell input = context_dim + H.
    B = 8
    context_dim = 16
    hidden_size = 32          # 4H = 128 -> gate pre-activations fill one vreg of lanes
    output_size = 24
    input_size = context_dim + hidden_size
    T = 6                     # decode steps for the time-fused variant

    key = jax.random.PRNGKey(0)
    k_ctx, k_h, k_c, k_params = jax.random.split(key, 4)

    context_seq = jax.random.normal(k_ctx, (T, B, context_dim), jnp.float32)
    h0 = jax.random.normal(k_h, (B, hidden_size), jnp.float32)
    c0 = jax.random.normal(k_c, (B, hidden_size), jnp.float32)

    params = init_decoder_params(k_params, input_size, hidden_size, output_size)
    prepped = prep_decoder_params(params, context_dim)   # ONE-TIME layout prep

    # --- single step (matches Decoder.forward exactly) ---
    mel, h1, c1 = decoder_forward(context_seq[0], h0, c0, prepped)
    jax.block_until_ready((mel, h1, c1))

    # --- T steps fused into one pallas_call ---
    mel_seq, h_seq, c_seq = decoder_forward_seq(context_seq, h0, c0, prepped)
    jax.block_until_ready((mel_seq, h_seq, c_seq))

    # Tight check vs the identical fused-weight math in plain XLA: validates the
    # Pallas plumbing (BlockSpecs, scratch carry across grid, packed output).
    mf, hf, cf = decoder_ref_folded_seq(context_seq, h0, c0, prepped)
    assert jnp.allclose(mel_seq, mf, atol=5e-4, rtol=5e-4)
    assert jnp.allclose(h_seq, hf, atol=5e-4, rtol=5e-4)
    assert jnp.allclose(c_seq, cf, atol=5e-4, rtol=5e-4)

    # Looser check vs the PyTorch-faithful unfused reference: validates the weight
    # fold itself. Tolerance absorbs MXU rounding differences between computing
    # h@(W1+W2) vs h@W1 + h@W2 at the backend's default f32 matmul precision.
    mr, hr, cr = decoder_ref_seq(context_seq, h0, c0, params)
    assert jnp.allclose(mel_seq, mr, atol=2e-2, rtol=2e-2)
    assert jnp.allclose(h_seq, hr, atol=2e-2, rtol=2e-2)
    assert jnp.allclose(c_seq, cr, atol=2e-2, rtol=2e-2)

    # Single-step call must agree with step 0 of the fused sequence.
    assert jnp.allclose(mel, mel_seq[0], atol=1e-5, rtol=1e-5)
    assert jnp.allclose(h1, h_seq[0], atol=1e-5, rtol=1e-5)
    assert jnp.allclose(c1, c_seq[0], atol=1e-5, rtol=1e-5)

    print("KERNEL_OK")
</pallas_src>

<mosaic_0001>
module attributes {stable_mosaic.version = 11 : i64} {
  func.func @decoder_seq_kernel(%arg0: i32, %arg1: memref<1x8x16xf32, #tpu.memory_space<vmem>>, %arg2: memref<8x32xf32, #tpu.memory_space<vmem>>, %arg3: memref<8x32xf32, #tpu.memory_space<vmem>>, %arg4: memref<16x128xf32, #tpu.memory_space<vmem>>, %arg5: memref<32x128xf32, #tpu.memory_space<vmem>>, %arg6: memref<1x128xf32, #tpu.memory_space<vmem>>, %arg7: memref<32x24xf32, #tpu.memory_space<vmem>>, %arg8: memref<1x24xf32, #tpu.memory_space<vmem>>, %arg9: memref<1x8x128xf32, #tpu.memory_space<vmem>>, %arg10: memref<8x32xf32, #tpu.memory_space<vmem>>, %arg11: memref<8x32xf32, #tpu.memory_space<vmem>>) attributes {dimension_semantics = [#tpu.dimension_semantics<arbitrary>], iteration_bounds = array<i64: 1>, scalar_prefetch = 0 : i64, scratch_operands = 2 : i64, tpu.core_type = #tpu.core_type<tc>, window_params = [{transform_indices = @transform_0, window_bounds = array<i64: 1, 8, 16>}, {pipeline_mode = #tpu.pipeline_mode<synchronous>, transform_indices = @transform_1, window_bounds = array<i64: 8, 32>}, {pipeline_mode = #tpu.pipeline_mode<synchronous>, transform_indices = @transform_2, window_bounds = array<i64: 8, 32>}, {pipeline_mode = #tpu.pipeline_mode<synchronous>, transform_indices = @transform_3, window_bounds = array<i64: 16, 128>}, {pipeline_mode = #tpu.pipeline_mode<synchronous>, transform_indices = @transform_4, window_bounds = array<i64: 32, 128>}, {pipeline_mode = #tpu.pipeline_mode<synchronous>, transform_indices = @transform_5, window_bounds = array<i64: 1, 128>}, {pipeline_mode = #tpu.pipeline_mode<synchronous>, transform_indices = @transform_6, window_bounds = array<i64: 32, 24>}, {pipeline_mode = #tpu.pipeline_mode<synchronous>, transform_indices = @transform_7, window_bounds = array<i64: 1, 24>}, {transform_indices = @transform_8, window_bounds = array<i64: 1, 8, 128>}]} {
    %c0_i32 = arith.constant 0 : i32
    %0 = arith.cmpi eq, %arg0, %c0_i32 : i32
    %1 = arith.extui %0 : i1 to i32
    %c0_i32_0 = arith.constant 0 : i32
    %2 = arith.cmpi ne, %1, %c0_i32_0 : i32
    scf.if %2 {
      %c0_30 = arith.constant 0 : index
      %c0_31 = arith.constant 0 : index
      %52 = vector.load %arg2[%c0_30, %c0_31] : memref<8x32xf32, #tpu.memory_space<vmem>>, vector<8x32xf32>
      %c0_32 = arith.constant 0 : index
      %c0_33 = arith.constant 0 : index
      %53 = vector.load %arg10[%c0_32, %c0_33] : memref<8x32xf32, #tpu.memory_space<vmem>>, vector<8x32xf32>
      tpu.vector_store %arg10[%c0_32, %c0_33], %52 {strides = array<i32>} : memref<8x32xf32, #tpu.memory_space<vmem>>, vector<8x32xf32>,
      %c0_34 = arith.constant 0 : index
      %c0_35 = arith.constant 0 : index
      %54 = vector.load %arg3[%c0_34, %c0_35] : memref<8x32xf32, #tpu.memory_space<vmem>>, vector<8x32xf32>
      %c0_36 = arith.constant 0 : index
      %c0_37 = arith.constant 0 : index
      %55 = vector.load %arg11[%c0_36, %c0_37] : memref<8x32xf32, #tpu.memory_space<vmem>>, vector<8x32xf32>
      tpu.vector_store %arg11[%c0_36, %c0_37], %54 {strides = array<i32>} : memref<8x32xf32, #tpu.memory_space<vmem>>, vector<8x32xf32>,
    } else {
    }
    %c0 = arith.constant 0 : index
    %c0_1 = arith.constant 0 : index
    %c0_2 = arith.constant 0 : index
    %3 = vector.load %arg1[%c0, %c0_1, %c0_2] : memref<1x8x16xf32, #tpu.memory_space<vmem>>, vector<1x8x16xf32>
    %4 = vector.shape_cast %3 : vector<1x8x16xf32> to vector<8x16xf32>
    %c0_3 = arith.constant 0 : index
    %c0_4 = arith.constant 0 : index
    %5 = vector.load %arg10[%c0_3, %c0_4] : memref<8x32xf32, #tpu.memory_space<vmem>>, vector<8x32xf32>
    %c0_5 = arith.constant 0 : index
    %c0_6 = arith.constant 0 : index
    %6 = vector.load %arg11[%c0_5, %c0_6] : memref<8x32xf32, #tpu.memory_space<vmem>>, vector<8x32xf32>
    %c0_7 = arith.constant 0 : index
    %c0_8 = arith.constant 0 : index
    %7 = vector.load %arg4[%c0_7, %c0_8] : memref<16x128xf32, #tpu.memory_space<vmem>>, vector<16x128xf32>
    %c0_9 = arith.constant 0 : index
    %c0_10 = arith.constant 0 : index
    %8 = vector.load %arg5[%c0_9, %c0_10] : memref<32x128xf32, #tpu.memory_space<vmem>>, vector<32x128xf32>
    %c0_11 = arith.constant 0 : index
    %c0_12 = arith.constant 0 : index
    %9 = vector.load %arg6[%c0_11, %c0_12] : memref<1x128xf32, #tpu.memory_space<vmem>>, vector<1x128xf32>
    %c0_13 = arith.constant 0 : index
    %c0_14 = arith.constant 0 : index
    %10 = vector.load %arg7[%c0_13, %c0_14] : memref<32x24xf32, #tpu.memory_space<vmem>>, vector<32x24xf32>
    %c0_15 = arith.constant 0 : index
    %c0_16 = arith.constant 0 : index
    %11 = vector.load %arg8[%c0_15, %c0_16] : memref<1x24xf32, #tpu.memory_space<vmem>>, vector<1x24xf32>
    %cst = arith.constant dense<0.000000e+00> : vector<8x128xf32>
    %12 = tpu.matmul %4, %7, %cst {dimension_numbers = #tpu.dot_dimension_numbers<[1], [0], [0], [1], [0, 0, 1, 1], [], []>} : vector<8x16xf32>, vector<16x128xf32>, vector<8x128xf32> -> vector<8x128xf32>
    %cst_17 = arith.constant dense<0.000000e+00> : vector<8x128xf32>
    %13 = tpu.matmul %5, %8, %cst_17 {dimension_numbers = #tpu.dot_dimension_numbers<[1], [0], [0], [1], [0, 0, 1, 1], [], []>} : vector<8x32xf32>, vector<32x128xf32>, vector<8x128xf32> -> vector<8x128xf32>
    %14 = arith.addf %12, %13 : vector<8x128xf32>
    %15 = vector.broadcast %9 : vector<1x128xf32> to vector<8x128xf32>
    %16 = arith.addf %14, %15 : vector<8x128xf32>
    %17 = vector.extract_strided_slice %16 {offsets = [0, 0], sizes = [8, 32], strides = [1, 1]} : vector<8x128xf32> to vector<8x32xf32>
    %18 = arith.negf %17 : vector<8x32xf32>
    %19 = math.exp %18 : vector<8x32xf32>
    %cst_18 = arith.constant 1.000000e+00 : f32
    %20 = vector.broadcast %cst_18 : f32 to vector<8x32xf32>
    %21 = arith.addf %20, %19 : vector<8x32xf32>
    %22 = arith.divf %20, %21 : vector<8x32xf32>
    %23 = vector.extract_strided_slice %16 {offsets = [0, 32], sizes = [8, 32], strides = [1, 1]} : vector<8x128xf32> to vector<8x32xf32>
    %24 = arith.negf %23 : vector<8x32xf32>
    %25 = math.exp %24 : vector<8x32xf32>
    %cst_19 = arith.constant 1.000000e+00 : f32
    %26 = vector.broadcast %cst_19 : f32 to vector<8x32xf32>
    %27 = arith.addf %26, %25 : vector<8x32xf32>
    %28 = arith.divf %26, %27 : vector<8x32xf32>
    %29 = vector.extract_strided_slice %16 {offsets = [0, 64], sizes = [8, 32], strides = [1, 1]} : vector<8x128xf32> to vector<8x32xf32>
    %30 = math.tanh %29 : vector<8x32xf32>
    %31 = vector.extract_strided_slice %16 {offsets = [0, 96], sizes = [8, 32], strides = [1, 1]} : vector<8x128xf32> to vector<8x32xf32>
    %32 = arith.negf %31 : vector<8x32xf32>
    %33 = math.exp %32 : vector<8x32xf32>
    %cst_20 = arith.constant 1.000000e+00 : f32
    %34 = vector.broadcast %cst_20 : f32 to vector<8x32xf32>
    %35 = arith.addf %34, %33 : vector<8x32xf32>
    %36 = arith.divf %34, %35 : vector<8x32xf32>
    %37 = arith.mulf %28, %6 : vector<8x32xf32>
    %38 = arith.mulf %22, %30 : vector<8x32xf32>
    %39 = arith.addf %37, %38 : vector<8x32xf32>
    %40 = math.tanh %39 : vector<8x32xf32>
    %41 = arith.mulf %36, %40 : vector<8x32xf32>
    %cst_21 = arith.constant dense<0.000000e+00> : vector<8x24xf32>
    %42 = tpu.matmul %41, %10, %cst_21 {dimension_numbers = #tpu.dot_dimension_numbers<[1], [0], [0], [1], [0, 0, 1, 1], [], []>} : vector<8x32xf32>, vector<32x24xf32>, vector<8x24xf32> -> vector<8x24xf32>
    %43 = vector.broadcast %11 : vector<1x24xf32> to vector<8x24xf32>
    %44 = arith.addf %42, %43 : vector<8x24xf32>
    %c0_22 = arith.constant 0 : index
    %c0_23 = arith.constant 0 : index
    %45 = vector.load %arg10[%c0_22, %c0_23] : memref<8x32xf32, #tpu.memory_space<vmem>>, vector<8x32xf32>
    tpu.vector_store %arg10[%c0_22, %c0_23], %41 {strides = array<i32>} : memref<8x32xf32, #tpu.memory_space<vmem>>, vector<8x32xf32>,
    %c0_24 = arith.constant 0 : index
    %c0_25 = arith.constant 0 : index
    %46 = vector.load %arg11[%c0_24, %c0_25] : memref<8x32xf32, #tpu.memory_space<vmem>>, vector<8x32xf32>
    tpu.vector_store %arg11[%c0_24, %c0_25], %39 {strides = array<i32>} : memref<8x32xf32, #tpu.memory_space<vmem>>, vector<8x32xf32>,
    %cst_26 = arith.constant 0.000000e+00 : f32
    %47 = vector.broadcast %cst_26 : f32 to vector<8x40xf32>
    %48 = tpu.concatenate %44, %41, %39, %47 in 1 : vector<8x24xf32>, vector<8x32xf32>, vector<8x32xf32>, vector<8x40xf32> -> vector<8x128xf32>
    %c0_27 = arith.constant 0 : index
    %c0_28 = arith.constant 0 : index
    %c0_29 = arith.constant 0 : index
    %49 = vector.load %arg9[%c0_27, %c0_28, %c0_29] : memref<1x8x128xf32, #tpu.memory_space<vmem>>, vector<1x8x128xf32>
    %50 = vector.shape_cast %49 : vector<1x8x128xf32> to vector<8x128xf32>
    %51 = vector.shape_cast %48 : vector<8x128xf32> to vector<1x8x128xf32>
    tpu.vector_store %arg9[%c0_27, %c0_28, %c0_29], %51 {strides = array<i32>} : memref<1x8x128xf32, #tpu.memory_space<vmem>>, vector<1x8x128xf32>,
    return
  }
  func.func @transform_0(%arg0: i32) -> (i32, i32, i32) {
    %c0_i32 = arith.constant 0 : i32
    %c0_i32_0 = arith.constant 0 : i32
    %c0_i32_1 = arith.constant 0 : i32
    return %arg0, %c0_i32, %c0_i32_0 : i32, i32, i32
  }
  func.func @transform_1(%arg0: i32) -> (i32, i32) {
    %c0_i32 = arith.constant 0 : i32
    %c0_i32_0 = arith.constant 0 : i32
    %c0_i32_1 = arith.constant 0 : i32
    return %c0_i32, %c0_i32_0 : i32, i32
  }
  func.func @transform_2(%arg0: i32) -> (i32, i32) {
    %c0_i32 = arith.constant 0 : i32
    %c0_i32_0 = arith.constant 0 : i32
    %c0_i32_1 = arith.constant 0 : i32
    return %c0_i32, %c0_i32_0 : i32, i32
  }
  func.func @transform_3(%arg0: i32) -> (i32, i32) {
    %c0_i32 = arith.constant 0 : i32
    %c0_i32_0 = arith.constant 0 : i32
    %c0_i32_1 = arith.constant 0 : i32
    return %c0_i32, %c0_i32_0 : i32, i32
  }
  func.func @transform_4(%arg0: i32) -> (i32, i32) {
    %c0_i32 = arith.constant 0 : i32
    %c0_i32_0 = arith.constant 0 : i32
    %c0_i32_1 = arith.constant 0 : i32
    return %c0_i32, %c0_i32_0 : i32, i32
  }
  func.func @transform_5(%arg0: i32) -> (i32, i32) {
    %c0_i32 = arith.constant 0 : i32
    %c0_i32_0 = arith.constant 0 : i32
    %c0_i32_1 = arith.constant 0 : i32
    return %c0_i32, %c0_i32_0 : i32, i32
  }
  func.func @transform_6(%arg0: i32) -> (i32, i32) {
    %c0_i32 = arith.constant 0 : i32
    %c0_i32_0 = arith.constant 0 : i32
    %c0_i32_1 = arith.constant 0 : i32
    return %c0_i32, %c0_i32_0 : i32, i32
  }
  func.func @transform_7(%arg0: i32) -> (i32, i32) {
    %c0_i32 = arith.constant 0 : i32
    %c0_i32_0 = arith.constant 0 : i32
    %c0_i32_1 = arith.constant 0 : i32
    return %c0_i32, %c0_i32_0 : i32, i32
  }
  func.func @transform_8(%arg0: i32) -> (i32, i32, i32) {
    %c0_i32 = arith.constant 0 : i32
    %c0_i32_0 = arith.constant 0 : i32
    %c0_i32_1 = arith.constant 0 : i32
    return %arg0, %c0_i32, %c0_i32_0 : i32, i32, i32
  }
}

</mosaic_0001>

<llo_original>
// kernel: _decoder_forward_seq_impl.1
$region0: #{_decoder_forward_seq_impl.1}
  #allocation0 [shape = 'u32[]', space=smem, size = 0x4, offset = 0x4, fixed_abs, tag = 'smem constant byte address 0x4 - core index']
  #allocation1 [shape = 'u32[144,128]{1,0:T(1,128)}', space=vmem, size = 0x12000, scoped, tag = 'internal scratch']
  #allocation2 [shape = 'f32[8,32]{1,0:T(8,128)}', space=vmem, size = 0x1000, scoped, tag = 'scratch operand']
  #allocation3 [shape = 'f32[8,32]{1,0:T(8,128)}', space=vmem, size = 0x1000, scoped, tag = 'scratch operand']
  %s0 = inlined_call_operand.vmem [shape: f32[1,8,16], index: 0, kind: input, shape index: {}]
  %s1 = inlined_call_operand.hbm [shape: f32[8,32], index: 1, kind: input, shape index: {}]
  %s2 = inlined_call_operand.hbm [shape: f32[8,32], index: 2, kind: input, shape index: {}]
  %s3 = inlined_call_operand.vmem [shape: f32[16,128], index: 3, kind: input, shape index: {}]
  %s4 = inlined_call_operand.vmem [shape: f32[32,128], index: 4, kind: input, shape index: {}]
  %s5 = inlined_call_operand.vmem [shape: f32[1,128], index: 5, kind: input, shape index: {}]
  %s6 = inlined_call_operand.vmem [shape: f32[32,24], index: 6, kind: input, shape index: {}]
  %s7 = inlined_call_operand.vmem [shape: f32[1,24], index: 7, kind: input, shape index: {}]
  %s8 = inlined_call_operand.vmem [shape: f32[1,8,128], index: 8, kind: output, shape index: {}]
  %s9 = sld [smem:[#allocation0]]
  $region54: #{_decoder_forward_seq_impl.1} parent=0
    _
  %s11 = ssub.s32 1, %s9
  %s12 = scalar_select 0, %s11, %s9
  $region1: #{_decoder_forward_seq_impl.1} parent=0
    #allocation4 [shape = 'u8[4096]{0}', space=vmem, size = 0x1000, scoped, tag = 'input window, operand 1, single buffered']
    #allocation5 [shape = 's32[1]{0}', space=sflag, size = 0x4, scoped, tag = 'scoped memory for _decoder_forward_seq_impl.1']
    #allocation6 [shape = 'u8[4096]{0}', space=vmem, size = 0x1000, scoped, tag = 'input window, operand 2, single buffered']
    #allocation7 [shape = 's32[1]{0}', space=sflag, size = 0x4, scoped, tag = 'scoped memory for _decoder_forward_seq_impl.1']
    %13 = vsyncpa [#allocation5], 0
    %14 = vsyncpa [#allocation7], 0
    // Predicated region
    $region2: #{_decoder_forward_seq_impl.1} parent=1 // pred_check
      _
    $region3: #{_decoder_forward_seq_impl.1} parent=1 // pred_check_branch
      %16 = sbr.rel (0) target = $region5
    $region4: #{_decoder_forward_seq_impl.1} parent=1 // pred_region
      _
    $region5: #{_decoder_forward_seq_impl.1} parent=1 // pred_fallthru
      _
    // Predicated region
    $region6: #{_decoder_forward_seq_impl.1} parent=1 // pred_check
      _
    $region7: #{_decoder_forward_seq_impl.1} parent=1 // pred_check_branch
      %18 = sbr.rel (0) target = $region9
    $region8: #{_decoder_forward_seq_impl.1} parent=1 // pred_region
      %s20 = ssub.s32 128, 128
      %21 = vsyncadd [#allocation5], %s20
      %s23 = sshll.u32 [#allocation4], 4
      %s24 = int_to_ptr.vmem [resolvable:$true] %s23
      %26 = dma.hbm_to_vmem [thread:$0]  %s1, 128, %s24, [#allocation5]
    $region9: #{_decoder_forward_seq_impl.1} parent=1 // pred_fallthru
      _
    // Predicated region
    $region10: #{_decoder_forward_seq_impl.1} parent=1 // pred_check
      _
    $region11: #{_decoder_forward_seq_impl.1} parent=1 // pred_check_branch
      %28 = sbr.rel (0) target = $region13
    $region12: #{_decoder_forward_seq_impl.1} parent=1 // pred_region
      %s30 = ssub.s32 128, 128
      %31 = vsyncadd [#allocation7], %s30
      %s33 = sshll.u32 [#allocation6], 4
      %s34 = int_to_ptr.vmem [resolvable:$true] %s33
      %36 = dma.hbm_to_vmem [thread:$0]  %s2, 128, %s34, [#allocation7]
    $region13: #{_decoder_forward_seq_impl.1} parent=1 // pred_fallthru
      _
    // Predicated region
    $region14: #{_decoder_forward_seq_impl.1} parent=1 // pred_check
      _
    $region15: #{_decoder_forward_seq_impl.1} parent=1 // pred_check_branch
      %38 = sbr.rel (0) target = $region17
    $region16: #{_decoder_forward_seq_impl.1} parent=1 // pred_region
      _
    $region17: #{_decoder_forward_seq_impl.1} parent=1 // pred_fallthru
      _
    // Predicated region
    $region18: #{_decoder_forward_seq_impl.1} parent=1 // pred_check
      _
    $region19: #{_decoder_forward_seq_impl.1} parent=1 // pred_check_branch
      %40 = sbr.rel (0) target = $region21
    $region20: #{_decoder_forward_seq_impl.1} parent=1 // pred_region
      _
    $region21: #{_decoder_forward_seq_impl.1} parent=1 // pred_fallthru
      _
    // Predicated region
    $region22: #{_decoder_forward_seq_impl.1} parent=1 // pred_check
      _
    $region23: #{_decoder_forward_seq_impl.1} parent=1 // pred_check_branch
      %42 = sbr.rel (0) target = $region25
    $region24: #{_decoder_forward_seq_impl.1} parent=1 // pred_region
      _
    $region25: #{_decoder_forward_seq_impl.1} parent=1 // pred_fallthru
      _
    // Predicated region
    $region26: #{_decoder_forward_seq_impl.1} parent=1 // pred_check
      _
    $region27: #{_decoder_forward_seq_impl.1} parent=1 // pred_check_branch
      %44 = sbr.rel (0) target = $region29
    $region28: #{_decoder_forward_seq_impl.1} parent=1 // pred_region
      _
    $region29: #{_decoder_forward_seq_impl.1} parent=1 // pred_fallthru
      _
    // Predicated region
    $region30: #{_decoder_forward_seq_impl.1} parent=1 // pred_check
      _
    $region31: #{_decoder_forward_seq_impl.1} parent=1 // pred_check_branch
      %46 = sbr.rel (0) target = $region33
    $region32: #{_decoder_forward_seq_impl.1} parent=1 // pred_region
      _
    $region33: #{_decoder_forward_seq_impl.1} parent=1 // pred_fallthru
      _
    // Predicated region
    $region34: #{_decoder_forward_seq_impl.1} parent=1 // pred_check
      _
    $region35: #{_decoder_forward_seq_impl.1} parent=1 // pred_check_branch
      %48 = sbr.rel (0) target = $region37
    $region36: #{_decoder_forward_seq_impl.1} parent=1 // pred_region
      %49 = dma.done [#allocation5], 128
    $region37: #{_decoder_forward_seq_impl.1} parent=1 // pred_fallthru
      _
    // Predicated region
    $region38: #{_decoder_forward_seq_impl.1} parent=1 // pred_check
      _
    $region39: #{_decoder_forward_seq_impl.1} parent=1 // pred_check_branch
      %51 = sbr.rel (0) target = $region41
    $region40: #{_decoder_forward_seq_impl.1} parent=1 // pred_region
      %52 = dma.done [#allocation7], 128
    $region41: #{_decoder_forward_seq_impl.1} parent=1 // pred_fallthru
      _
    %p53 = scmp.eq.s32.totalorder 0, 0
    // Predicated region
    $region42: #{_decoder_forward_seq_impl.1} parent=1 // pred_check
      %p54 = pneg %p53
    $region43: #{_decoder_forward_seq_impl.1} parent=1 // pred_check_branch
      %56 = sbr.rel (%p54) target = $region45
    $region44: #{_decoder_forward_seq_impl.1} parent=1 // pred_region
      %v57 = vld [vmem:[#allocation4] sm:$0xff]
      %vm58 = vcmask 261120
      %59 = vst.msk [vmem:[#allocation2] sm:$0xff] %vm58, %v57
      %v60 = vld [vmem:[#allocation6] sm:$0xff]
      %61 = vst.msk [vmem:[#allocation3] sm:$0xff] %vm58, %v60
    $region45: #{_decoder_forward_seq_impl.1} parent=1 // pred_fallthru
      _
    %v62 = vld [vmem:[%s0] sm:$0xff]
    %v63 = vld [vmem:[#allocation2] sm:$0xff]
    %v64 = vld [vmem:[#allocation3] sm:$0xff]
    %v65 = vld [vmem:[%s3] sm:$0xff]
    %v66 = vld [vmem:[%s3 + $0x8] sm:$0xff]
    %v67 = vld [vmem:[%s4] sm:$0xff]
    %v68 = vld [vmem:[%s4 + $0x8] sm:$0xff]
    %v69 = vld [vmem:[%s4 + $0x10] sm:$0xff]
    %v70 = vld [vmem:[%s4 + $0x18] sm:$0xff]
    %v71 = vld [vmem:[%s5] sm:$0x1]
    %v72 = vld [vmem:[%s6] sm:$0xff]
    %v73 = vld [vmem:[%s6 + $0x8] sm:$0xff]
    %v74 = vld [vmem:[%s6 + $0x10] sm:$0xff]
    %v75 = vld [vmem:[%s6 + $0x18] sm:$0xff]
    %v76 = vld [vmem:[%s7] sm:$0x1]
    %vm77 = vcmask 261120
    %v79 = vsel %vm77, %v63, 0
    %81 = vmatprep.subr.mxu0 0.0
    %82 = vmatpush1.msra.mxu0 %v67
    %83 = vmatprep.subr.mxu0 0.0
    %84 = vmatpush1.msra.mxu0 %v68
    %85 = vmatprep.subr.mxu0 0.0
    %86 = vmatpush1.msra.mxu0 %v69
    %87 = vmatprep.subr.mxu0 0.0
    %88 = vmatpush1.msra.mxu0 %v70
    %89 = vmatprep.subr.mxu0 0.0
    %90 = vmatpush1.msra.mxu0 0.0
    %91 = vmatprep.subr.mxu0 0.0
    %92 = vmatpush1.msra.mxu0 0.0
    %93 = vmatprep.subr.mxu0 0.0
    %94 = vmatpush1.msra.mxu0 0.0
    %95 = vmatprep.subr.mxu0 0.0
    %96 = vmatpush1.msra.mxu0 0.0
    %97 = vmatprep.subr.mxu0 0.0
    %98 = vmatpush1.msra.mxu0 0.0
    %99 = vmatprep.subr.mxu0 0.0
    %100 = vmatpush1.msra.mxu0 0.0
    %101 = vmatprep.subr.mxu0 0.0
    %102 = vmatpush1.msra.mxu0 0.0
    %103 = vmatprep.subr.mxu0 0.0
    %104 = vmatpush1.msra.mxu0 0.0
    %105 = vmatprep.subr.mxu0 0.0
    %106 = vmatpush1.msra.mxu0 0.0
    %107 = vmatprep.subr.mxu0 0.0
    %108 = vmatpush1.msra.mxu0 0.0
    %109 = vmatprep.subr.mxu0 0.0
    %110 = vmatpush1.msra.mxu0 0.0
    %111 = vmatprep.subr.mxu0 0.0
    %112 = vmatpush1.msra.mxu0 0.0
    %113 = vmatprep.subr.mxu0 0.0
    %114 = vmatpush1.msra.mxu0 0.0
    %115 = vmatprep.subr.mxu0 0.0
    %116 = vmatpush1.msra.mxu0 0.0
    %117 = vmatprep.subr.mxu0 0.0
    %118 = vmatpush1.msra.mxu0 0.0
    %119 = vmatprep.subr.mxu0 0.0
    %120 = vmatpush1.msra.mxu0 0.0
    %121 = vmatprep.subr.mxu0 0.0
    %122 = vmatpush1.msra.mxu0 0.0
    %123 = vmatprep.subr.mxu0 0.0
    %124 = vmatpush1.msra.mxu0 0.0
    %125 = vmatprep.subr.mxu0 0.0
    %126 = vmatpush1.msra.mxu0 0.0
    %127 = vmatprep.subr.mxu0 0.0
    %128 = vmatpush1.msra.mxu0 0.0
    %129 = vmatprep.subr.mxu0 0.0
    %130 = vmatpush1.msra.mxu0 0.0
    %131 = vmatprep.subr.mxu0 0.0
    %132 = vmatpush1.msra.mxu0 0.0
    %133 = vmatprep.subr.mxu0 0.0
    %134 = vmatpush1.msra.mxu0 0.0
    %135 = vmatprep.subr.mxu0 0.0
    %136 = vmatpush1.msra.mxu0 0.0
    %137 = vmatprep.subr.mxu0 0.0
    %138 = vmatpush1.msra.mxu0 0.0
    %139 = vmatprep.subr.mxu0 0.0
    %140 = vmatpush1.msra.mxu0 0.0
    %141 = vmatprep.subr.mxu0 0.0
    %142 = vmatpush1.msra.mxu0 0.0
    %143 = vmatprep.subr.mxu0 0.0
    %144 = vmatpush1.msra.mxu0 0.0
    %145 = vmatprep.mubr.f32.mxu0 0.0
    %146 = vmatmul.mubr.f32.gmra.mrb[0].mxu0 %v79
    %v147 = vpop.f32.mrb[0].mxu0
    %v148 = vadd.f32 0.0, %v147
    %v149 = vpop.f32.mrb[0].mxu0
    %150 = vdwg.mxu0
    %vm151 = vcmask 130048
    %v153 = vsel %vm151, %v62, 0
    %155 = vmatprep.subr.mxu0 0.0
    %156 = vmatpush1.msra.mxu0 %v65
    %157 = vmatprep.subr.mxu0 0.0
    %158 = vmatpush1.msra.mxu0 %v66
    %159 = vmatprep.subr.mxu0 0.0
    %160 = vmatpush1.msra.mxu0 0.0
    %161 = vmatprep.subr.mxu0 0.0
    %162 = vmatpush1.msra.mxu0 0.0
    %163 = vmatprep.subr.mxu0 0.0
    %164 = vmatpush1.msra.mxu0 0.0
    %165 = vmatprep.subr.mxu0 0.0
    %166 = vmatpush1.msra.mxu0 0.0
    %167 = vmatprep.subr.mxu0 0.0
    %168 = vmatpush1.msra.mxu0 0.0
    %169 = vmatprep.subr.mxu0 0.0
    %170 = vmatpush1.msra.mxu0 0.0
    %171 = vmatprep.subr.mxu0 0.0
    %172 = vmatpush1.msra.mxu0 0.0
    %173 = vmatprep.subr.mxu0 0.0
    %174 = vmatpush1.msra.mxu0 0.0
    %175 = vmatprep.subr.mxu0 0.0
    %176 = vmatpush1.msra.mxu0 0.0
    %177 = vmatprep.subr.mxu0 0.0
    %178 = vmatpush1.msra.mxu0 0.0
    %179 = vmatprep.subr.mxu0 0.0
    %180 = vmatpush1.msra.mxu0 0.0
    %181 = vmatprep.subr.mxu0 0.0
    %182 = vmatpush1.msra.mxu0 0.0
    %183 = vmatprep.subr.mxu0 0.0
    %184 = vmatpush1.msra.mxu0 0.0
    %185 = vmatprep.subr.mxu0 0.0
    %186 = vmatpush1.msra.mxu0 0.0
    %187 = vmatprep.subr.mxu0 0.0
    %188 = vmatpush1.msra.mxu0 0.0
    %189 = vmatprep.subr.mxu0 0.0
    %190 = vmatpush1.msra.mxu0 0.0
    %191 = vmatprep.subr.mxu0 0.0
    %192 = vmatpush1.msra.mxu0 0.0
    %193 = vmatprep.subr.mxu0 0.0
    %194 = vmatpush1.msra.mxu0 0.0
    %195 = vmatprep.subr.mxu0 0.0
    %196 = vmatpush1.msra.mxu0 0.0
    %197 = vmatprep.subr.mxu0 0.0
    %198 = vmatpush1.msra.mxu0 0.0
    %199 = vmatprep.subr.mxu0 0.0
    %200 = vmatpush1.msra.mxu0 0.0
    %201 = vmatprep.subr.mxu0 0.0
    %202 = vmatpush1.msra.mxu0 0.0
    %203 = vmatprep.subr.mxu0 0.0
    %204 = vmatpush1.msra.mxu0 0.0
    %205 = vmatprep.subr.mxu0 0.0
    %206 = vmatpush1.msra.mxu0 0.0
    %207 = vmatprep.subr.mxu0 0.0
    %208 = vmatpush1.msra.mxu0 0.0
    %209 = vmatprep.subr.mxu0 0.0
    %210 = vmatpush1.msra.mxu0 0.0
    %211 = vmatprep.subr.mxu0 0.0
    %212 = vmatpush1.msra.mxu0 0.0
    %213 = vmatprep.subr.mxu0 0.0
    %214 = vmatpush1.msra.mxu0 0.0
    %215 = vmatprep.subr.mxu0 0.0
    %216 = vmatpush1.msra.mxu0 0.0
    %217 = vmatprep.subr.mxu0 0.0
    %218 = vmatpush1.msra.mxu0 0.0
    %219 = vmatprep.mubr.f32.mxu0 0.0
    %220 = vmatmul.mubr.f32.gmra.mrb[0].mxu0 %v153
    %v221 = vpop.f32.mrb[0].mxu0
    %v222 = vadd.f32 %v148, %v221
    %v223 = vpop.f32.mrb[0].mxu0
    %224 = vdwg.mxu0
    %v226 = vlaneseq
    %v227 = vshrl.u32 %v226, 7
    %v228 = vsub.s32 0, %v227
    %v229 = vrot.slane %v71, %v228
    %v231 = vadd.f32 %v222, %v229
    %v232 = vxor.u32 %v231, 2147483648
    %v233 = vmul.f32 %v232, 1.442695
    %v234 = vpow.pop %v233
    %v235 = vadd.f32 %v234, 1.0
    %v236 = vrcp.pop %v235
    %v237 = vmul.f32 1.0, %v236
    %v238 = vtanh.pop %v231
    %240 = vrot.lane.b32.xlu0 %v64, 32
    %v241 = vpop.permute.xlu0 %240
    %v243 = vmul.f32 %v237, %v241
    %245 = vrot.lane.b32.xlu0 %v238, 64
    %v246 = vpop.permute.xlu0 %245
    %v248 = vmul.f32 %v237, %v246
    %250 = vrot.lane.b32.xlu0 %v248, 32
    %v251 = vpop.permute.xlu0 %250
    %v253 = vadd.f32 %v243, %v251
    %v254 = vtanh.pop %v253
    %256 = vrot.lane.b32.xlu0 %v254, 64
    %v257 = vpop.permute.xlu0 %256
    %v259 = vmul.f32 %v237, %v257
    %v261 = vlaneseq
    %v262 = vshrl.u32 %v261, 7
    %v263 = vsub.s32 0, %v262
    %v264 = vrot.slane %v76, %v263
    %267 = vrot.lane.b32.xlu0 %v259, 32
    %v268 = vpop.permute.xlu0 %267
    %v269 = vsel %vm77, %v268, 0
    %271 = vmatprep.subr.mxu0 0.0
    %272 = vmatpush1.msra.mxu0 %v72
    %273 = vmatprep.subr.mxu0 0.0
    %274 = vmatpush1.msra.mxu0 %v73
    %275 = vmatprep.subr.mxu0 0.0
    %276 = vmatpush1.msra.mxu0 %v74
    %277 = vmatprep.subr.mxu0 0.0
    %278 = vmatpush1.msra.mxu0 %v75
    %279 = vmatprep.subr.mxu0 0.0
    %280 = vmatpush1.msra.mxu0 0.0
    %281 = vmatprep.subr.mxu0 0.0
    %282 = vmatpush1.msra.mxu0 0.0
    %283 = vmatprep.subr.mxu0 0.0
    %284 = vmatpush1.msra.mxu0 0.0
    %285 = vmatprep.subr.mxu0 0.0
    %286 = vmatpush1.msra.mxu0 0.0
    %287 = vmatprep.subr.mxu0 0.0
    %288 = vmatpush1.msra.mxu0 0.0
    %289 = vmatprep.subr.mxu0 0.0
    %290 = vmatpush1.msra.mxu0 0.0
    %291 = vmatprep.subr.mxu0 0.0
    %292 = vmatpush1.msra.mxu0 0.0
    %293 = vmatprep.subr.mxu0 0.0
    %294 = vmatpush1.msra.mxu0 0.0
    %295 = vmatprep.subr.mxu0 0.0
    %296 = vmatpush1.msra.mxu0 0.0
    %297 = vmatprep.subr.mxu0 0.0
    %298 = vmatpush1.msra.mxu0 0.0
    %299 = vmatprep.subr.mxu0 0.0
    %300 = vmatpush1.msra.mxu0 0.0
    %301 = vmatprep.subr.mxu0 0.0
    %302 = vmatpush1.msra.mxu0 0.0
    %303 = vmatprep.subr.mxu0 0.0
    %304 = vmatpush1.msra.mxu0 0.0
    %305 = vmatprep.subr.mxu0 0.0
    %306 = vmatpush1.msra.mxu0 0.0
    %307 = vmatprep.subr.mxu0 0.0
    %308 = vmatpush1.msra.mxu0 0.0
    %309 = vmatprep.subr.mxu0 0.0
    %310 = vmatpush1.msra.mxu0 0.0
    %311 = vmatprep.subr.mxu0 0.0
    %312 = vmatpush1.msra.mxu0 0.0
    %313 = vmatprep.subr.mxu0 0.0
    %314 = vmatpush1.msra.mxu0 0.0
    %315 = vmatprep.subr.mxu0 0.0
    %316 = vmatpush1.msra.mxu0 0.0
    %317 = vmatprep.subr.mxu0 0.0
    %318 = vmatpush1.msra.mxu0 0.0
    %319 = vmatprep.subr.mxu0 0.0
    %320 = vmatpush1.msra.mxu0 0.0
    %321 = vmatprep.subr.mxu0 0.0
    %322 = vmatpush1.msra.mxu0 0.0
    %323 = vmatprep.subr.mxu0 0.0
    %324 = vmatpush1.msra.mxu0 0.0
    %325 = vmatprep.subr.mxu0 0.0
    %326 = vmatpush1.msra.mxu0 0.0
    %327 = vmatprep.subr.mxu0 0.0
    %328 = vmatpush1.msra.mxu0 0.0
    %329 = vmatprep.subr.mxu0 0.0
    %330 = vmatpush1.msra.mxu0 0.0
    %331 = vmatprep.subr.mxu0 0.0
    %332 = vmatpush1.msra.mxu0 0.0
    %333 = vmatprep.subr.mxu0 0.0
    %334 = vmatpush1.msra.mxu0 0.0
    %335 = vmatprep.mubr.f32.mxu0 0.0
    %336 = vmatmul.mubr.f32.gmra.mrb[0].mxu0 %v269
    %v337 = vpop.f32.mrb[0].mxu0
    %v338 = vadd.f32 %v264, %v337
    %v339 = vpop.f32.mrb[0].mxu0
    %340 = vdwg.mxu0
    %342 = vst.msk [vmem:[#allocation2] sm:$0xff] %vm77, %v268
    %344 = vrot.lane.b32.xlu0 %v253, 96
    %v345 = vpop.permute.xlu0 %344
    %347 = vst.msk [vmem:[#allocation3] sm:$0xff] %vm77, %v345
    %348 = vrot.lane.b32.xlu0 %v259, 56
    %v349 = vpop.permute.xlu0 %348
    %351 = vrot.lane.b32.xlu0 %v253, 24
    %v352 = vpop.permute.xlu0 %351
    %vm354 = vcmask 195584
    %v355 = vsel %vm354, %v338, %v349
    %vm356 = vcmask 457728
    %v357 = vsel %vm356, %v355, %v352
    %vm358 = vcmask 719872
    %v359 = vsel %vm358, %v357, 0.0
    %360 = vst [vmem:[%s8] sm:$0xff] %v359
    // Predicated region
    $region46: #{_decoder_forward_seq_impl.1} parent=1 // pred_check
      _
    $region47: #{_decoder_forward_seq_impl.1} parent=1 // pred_check_branch
      %362 = sbr.rel (0) target = $region49
    $region48: #{_decoder_forward_seq_impl.1} parent=1 // pred_region
      _
    $region49: #{_decoder_forward_seq_impl.1} parent=1 // pred_fallthru
      _
    // Predicated region
    $region50: #{_decoder_forward_seq_impl.1} parent=1 // pred_check
      _
    $region51: #{_decoder_forward_seq_impl.1} parent=1 // pred_check_branch
      %364 = sbr.rel (0) target = $region53
    $region52: #{_decoder_forward_seq_impl.1} parent=1 // pred_region
      _
    $region53: #{_decoder_forward_seq_impl.1} parent=1 // pred_fallthru
      _
    %365 = vsyncpa [#allocation5], 1
    %366 = vsyncpa [#allocation7], 1

</llo_original>
